<compile_context>
chip_gen: v7x
topology: tpu7x:2x2x1
jax: 0.10.0
libtpu: 0.0.40
codegen_flags: <defaults>
</compile_context>

<pallas_src>
import functools
import math

import jax
import jax.numpy as jnp
from jax.experimental import pallas as pl
from jax.experimental.pallas import tpu as pltpu


def _sinusoidal_pos_table(n_positions, d_hid):
    """Same table as pypots PositionalEncoding (fixed buffer, computed once)."""
    position = jnp.arange(n_positions, dtype=jnp.float32)[:, None]
    div_term = jnp.exp(
        jnp.arange(0, d_hid, 2, dtype=jnp.float32) * (-math.log(10000.0) / d_hid)
    )
    angles = position * div_term                       # [n_positions, d_hid//2]
    pe = jnp.zeros((n_positions, d_hid), dtype=jnp.float32)
    pe = pe.at[:, 0::2].set(jnp.sin(angles))
    pe = pe.at[:, 1::2].set(jnp.cos(angles))
    return pe


def _round_up(v, m):
    return ((v + m - 1) // m) * m


def _vmem_budget_bytes():
    """Generation-aware VMEM budget with headroom for compiler scratch."""
    try:
        info = pltpu.get_tpu_info()
        cap = int(getattr(info, "vmem_capacity_bytes"))
        return int(min(cap * 3 // 4, 100 << 20))       # ~96 MiB on 128 MiB parts
    except Exception:
        return 48 << 20                                 # safe on v7x's 64 MiB VMEM


def _patch_embed_kernel(*refs, patch_size, patch_stride, seq_len, num_patch,
                        d_model, add_pos):
    if add_pos:
        x_ref, w_ref, pos_ref, o_ref = refs
    else:
        x_ref, w_ref, o_ref = refs
        pos_ref = None

    w = w_ref[...]                                     # [patch_size, d_model], tiny, resident
    tile_r = x_ref.shape[0]

    # Replication-pad source, hoisted; only built if some window crosses the end.
    last_window_end = (num_patch - 1) * patch_stride + patch_size
    last_rep = None
    if last_window_end > seq_len:
        last_rep = jnp.broadcast_to(
            x_ref[:, seq_len - 1 : seq_len], (tile_r, patch_size)
        )

    for p in range(num_patch):                         # static unroll over patches
        start = p * patch_stride
        end = start + patch_size
        if start >= seq_len:
            patch = last_rep                           # fully inside the pad region
        elif end > seq_len:
            # Window runs past the real series: fuse the replication pad here.
            patch = jnp.concatenate(
                [x_ref[:, start:seq_len], last_rep[:, : end - seq_len]], axis=1
            )
        else:
            patch = x_ref[:, start:end]                # plain per-patch vld off the Ref

        # patch @ W  (nn.Linear, no bias), f32 accumulation on the MXU.
        y = jnp.dot(patch, w, preferred_element_type=jnp.float32)  # [tile_r, d_model]
        if add_pos:
            y = y + pos_ref[p : p + 1, :]

        # Direct per-patch store — no concat, no long-lived f32 partials.
        o_ref[:, p * d_model : (p + 1) * d_model] = y.astype(o_ref.dtype)


def patch_embedding(x, weight, *, patch_size, patch_stride, padding,
                    positional_embedding=True):
    """x: [bs, n_features, seq_len]; weight: nn.Linear weight [d_model, patch_size]."""
    bs, n_features, seq_len = x.shape
    d_model = weight.shape[0]
    assert weight.shape == (d_model, patch_size)

    l_pad = seq_len + padding
    num_patch = (l_pad - patch_size) // patch_stride + 1
    assert num_patch >= 1
    out_cols = num_patch * d_model

    r = bs * n_features
    x2d = x.reshape(r, seq_len)                        # contiguous, free reshape
    # One-time, negligible wrapper-side transpose: [patch_size, d_model].
    w_t = weight.astype(x.dtype).T

    add_pos = bool(positional_embedding)
    pos = _sinusoidal_pos_table(num_patch, d_model) if add_pos else None

    itemsize = jnp.dtype(x.dtype).itemsize
    row_align = 8 if itemsize >= 4 else 16             # bf16/int8 pack 16/32 sublanes

    # ---- Row tiling: cdiv grid (ragged last block OK), >=2 blocks when possible,
    # capped at 512 rows and by the per-generation VMEM budget.
    budget = _vmem_budget_bytes()
    resident = 2 * (patch_size * d_model * itemsize + (out_cols * 4 if add_pos else 0))
    per_row = 2 * (seq_len + out_cols) * itemsize + 2 * d_model * 4  # dbl-buffered tiles + f32 temps
    max_tile_r = max(row_align,
                     ((max(budget - resident, per_row)) // per_row) // row_align * row_align)

    if r > row_align:
        tile_r = min(512, max_tile_r, _round_up(pl.cdiv(r, 2), row_align))
        tile_r = max(tile_r, row_align)
    else:
        tile_r = row_align
    grid = (pl.cdiv(r, tile_r),)

    kernel = functools.partial(
        _patch_embed_kernel,
        patch_size=patch_size, patch_stride=patch_stride,
        seq_len=seq_len, num_patch=num_patch, d_model=d_model, add_pos=add_pos,
    )

    vmem_bytes = (
        2 * tile_r * seq_len * itemsize                 # input tile (double-buffered)
        + 2 * tile_r * out_cols * itemsize              # output tile (double-buffered)
        + resident                                      # weight (+ pos) resident
        + 2 * tile_r * d_model * 4                      # f32 per-patch temporaries
    )
    vmem_limit = int(min(budget, max(8 << 20, 2 * vmem_bytes)))

    args = [x2d, w_t] + ([pos] if add_pos else [])
    out_shape = jax.ShapeDtypeStruct((r, out_cols), x.dtype)

    def _run(single_buffer_constants):
        const_kwargs = (
            dict(pipeline_mode=pl.Buffered(1)) if single_buffer_constants else {}
        )
        in_specs = [
            pl.BlockSpec((tile_r, seq_len), lambda i: (i, 0)),
            pl.BlockSpec((patch_size, d_model), lambda i: (0, 0), **const_kwargs),
        ]
        if add_pos:
            in_specs.append(
                pl.BlockSpec((num_patch, d_model), lambda i: (0, 0), **const_kwargs)
            )
        return pl.pallas_call(
            kernel,
            out_shape=out_shape,
            grid=grid,
            in_specs=in_specs,
            out_specs=pl.BlockSpec((tile_r, out_cols), lambda i: (i, 0)),
            compiler_params=pltpu.CompilerParams(
                dimension_semantics=("parallel",),
                vmem_limit_bytes=vmem_limit,
            ),
        )(*args)

    try:
        # Single-buffer the constant-index weight/pos operands (saves one VMEM copy).
        out2d = _run(True)
    except Exception:
        # Fallback: default (double-buffered) specs if Buffered(1) is rejected.
        out2d = _run(False)

    # TODO(synk): nn.Dropout is identity in eval mode; training-mode dropout
    # (pltpu.prng_* masking) is not implemented here.
    return out2d.reshape(r, num_patch, d_model)         # contiguous, free reshape


def _reference(x, weight, *, patch_size, patch_stride, padding, positional_embedding=True):
    bs, nf, seq_len = x.shape
    d_model = weight.shape[0]
    if padding > 0:
        x = jnp.concatenate(
            [x, jnp.broadcast_to(x[:, :, -1:], (bs, nf, padding))], axis=-1
        )
    l_pad = seq_len + padding
    num_patch = (l_pad - patch_size) // patch_stride + 1
    idx = jnp.arange(num_patch)[:, None] * patch_stride + jnp.arange(patch_size)[None, :]
    patches = x[:, :, idx]                               # [bs, nf, num_patch, patch_size]
    patches = patches.reshape(bs * nf, num_patch, patch_size)
    y = jnp.einsum("rps,ds->rpd", patches, weight)
    if positional_embedding:
        y = y + _sinusoidal_pos_table(num_patch, d_model)[None, :, :]
    return y


if __name__ == "__main__":
    # Small shapes consistent with the module.
    bs, n_features, seq_len = 2, 4, 16
    d_model, patch_size, patch_stride, padding = 32, 8, 4, 4
    num_patch = (seq_len + padding - patch_size) // patch_stride + 1   # = 4

    key = jax.random.PRNGKey(0)
    kx, kw = jax.random.split(key)
    x = jax.random.normal(kx, (bs, n_features, seq_len), dtype=jnp.float32)
    # Deterministic synthetic nn.Linear(patch_size, d_model, bias=False) weight.
    weight = jax.random.normal(kw, (d_model, patch_size), dtype=jnp.float32) * 0.1

    out = patch_embedding(
        x, weight, patch_size=patch_size, patch_stride=patch_stride,
        padding=padding, positional_embedding=True,
    )
    out = jax.block_until_ready(out)
    ref = _reference(
        x, weight, patch_size=patch_size, patch_stride=patch_stride,
        padding=padding, positional_embedding=True,
    )
    assert out.shape == (bs * n_features, num_patch, d_model)
    assert jnp.allclose(out, ref, atol=1e-5, rtol=1e-5), "mismatch vs reference (pos)"

    # Also exercise the positional_embedding=False path.
    out2 = jax.block_until_ready(
        patch_embedding(
            x, weight, patch_size=patch_size, patch_stride=patch_stride,
            padding=padding, positional_embedding=False,
        )
    )
    ref2 = _reference(
        x, weight, patch_size=patch_size, patch_stride=patch_stride,
        padding=padding, positional_embedding=False,
    )
    assert jnp.allclose(out2, ref2, atol=1e-5, rtol=1e-5), "mismatch vs reference (no pos)"

    print("KERNEL_OK")
</pallas_src>

<mosaic_0001>
module attributes {stable_mosaic.version = 11 : i64} {
  func.func @_patch_embed_kernel(%arg0: i32, %arg1: memref<8x16xf32, #tpu.memory_space<vmem>>, %arg2: memref<8x32xf32, #tpu.memory_space<vmem>>, %arg3: memref<4x32xf32, #tpu.memory_space<vmem>>, %arg4: memref<8x128xf32, #tpu.memory_space<vmem>>) attributes {dimension_semantics = [#tpu.dimension_semantics<parallel>], iteration_bounds = array<i64: 1>, scalar_prefetch = 0 : i64, scratch_operands = 0 : i64, tpu.core_type = #tpu.core_type<tc>, window_params = [{transform_indices = @transform_0, window_bounds = array<i64: 8, 16>}, {pipeline_mode = #tpu.pipeline_mode<synchronous>, transform_indices = @transform_1, window_bounds = array<i64: 8, 32>}, {pipeline_mode = #tpu.pipeline_mode<synchronous>, transform_indices = @transform_2, window_bounds = array<i64: 4, 32>}, {transform_indices = @transform_3, window_bounds = array<i64: 8, 128>}]} {
    %c0 = arith.constant 0 : index
    %c0_0 = arith.constant 0 : index
    %0 = vector.load %arg2[%c0, %c0_0] : memref<8x32xf32, #tpu.memory_space<vmem>>, vector<8x32xf32>
    %c0_1 = arith.constant 0 : index
    %c15 = arith.constant 15 : index
    %1 = vector.load %arg1[%c0_1, %c15] : memref<8x16xf32, #tpu.memory_space<vmem>>, vector<8x1xf32>
    %2 = vector.shape_cast %1 : vector<8x1xf32> to vector<8x1xf32>
    %3 = vector.broadcast %2 : vector<8x1xf32> to vector<8x8xf32>
    %c0_2 = arith.constant 0 : index
    %c0_3 = arith.constant 0 : index
    %4 = vector.load %arg1[%c0_2, %c0_3] : memref<8x16xf32, #tpu.memory_space<vmem>>, vector<8x8xf32>
    %cst = arith.constant dense<0.000000e+00> : vector<8x32xf32>
    %5 = tpu.matmul %4, %0, %cst {dimension_numbers = #tpu.dot_dimension_numbers<[1], [0], [0], [1], [0, 0, 1, 1], [], []>} : vector<8x8xf32>, vector<8x32xf32>, vector<8x32xf32> -> vector<8x32xf32>
    %c0_4 = arith.constant 0 : index
    %c0_5 = arith.constant 0 : index
    %6 = vector.load %arg3[%c0_4, %c0_5] : memref<4x32xf32, #tpu.memory_space<vmem>>, vector<1x32xf32>
    %7 = vector.broadcast %6 : vector<1x32xf32> to vector<8x32xf32>
    %8 = arith.addf %5, %7 : vector<8x32xf32>
    %c0_6 = arith.constant 0 : index
    %c0_7 = arith.constant 0 : index
    %9 = vector.load %arg4[%c0_6, %c0_7] : memref<8x128xf32, #tpu.memory_space<vmem>>, vector<8x32xf32>
    tpu.vector_store %arg4[%c0_6, %c0_7], %8 {strides = array<i32>} : memref<8x128xf32, #tpu.memory_space<vmem>>, vector<8x32xf32>,
    %c0_8 = arith.constant 0 : index
    %c4 = arith.constant 4 : index
    %10 = vector.load %arg1[%c0_8, %c4] : memref<8x16xf32, #tpu.memory_space<vmem>>, vector<8x8xf32>
    %cst_9 = arith.constant dense<0.000000e+00> : vector<8x32xf32>
    %11 = tpu.matmul %10, %0, %cst_9 {dimension_numbers = #tpu.dot_dimension_numbers<[1], [0], [0], [1], [0, 0, 1, 1], [], []>} : vector<8x8xf32>, vector<8x32xf32>, vector<8x32xf32> -> vector<8x32xf32>
    %c1 = arith.constant 1 : index
    %c0_10 = arith.constant 0 : index
    %12 = vector.load %arg3[%c1, %c0_10] : memref<4x32xf32, #tpu.memory_space<vmem>>, vector<1x32xf32>
    %13 = vector.broadcast %12 : vector<1x32xf32> to vector<8x32xf32>
    %14 = arith.addf %11, %13 : vector<8x32xf32>
    %c0_11 = arith.constant 0 : index
    %c32 = arith.constant 32 : index
    %15 = vector.load %arg4[%c0_11, %c32] : memref<8x128xf32, #tpu.memory_space<vmem>>, vector<8x32xf32>
    tpu.vector_store %arg4[%c0_11, %c32], %14 {strides = array<i32>} : memref<8x128xf32, #tpu.memory_space<vmem>>, vector<8x32xf32>,
    %c0_12 = arith.constant 0 : index
    %c8 = arith.constant 8 : index
    %16 = vector.load %arg1[%c0_12, %c8] : memref<8x16xf32, #tpu.memory_space<vmem>>, vector<8x8xf32>
    %cst_13 = arith.constant dense<0.000000e+00> : vector<8x32xf32>
    %17 = tpu.matmul %16, %0, %cst_13 {dimension_numbers = #tpu.dot_dimension_numbers<[1], [0], [0], [1], [0, 0, 1, 1], [], []>} : vector<8x8xf32>, vector<8x32xf32>, vector<8x32xf32> -> vector<8x32xf32>
    %c2 = arith.constant 2 : index
    %c0_14 = arith.constant 0 : index
    %18 = vector.load %arg3[%c2, %c0_14] : memref<4x32xf32, #tpu.memory_space<vmem>>, vector<1x32xf32>
    %19 = vector.broadcast %18 : vector<1x32xf32> to vector<8x32xf32>
    %20 = arith.addf %17, %19 : vector<8x32xf32>
    %c0_15 = arith.constant 0 : index
    %c64 = arith.constant 64 : index
    %21 = vector.load %arg4[%c0_15, %c64] : memref<8x128xf32, #tpu.memory_space<vmem>>, vector<8x32xf32>
    tpu.vector_store %arg4[%c0_15, %c64], %20 {strides = array<i32>} : memref<8x128xf32, #tpu.memory_space<vmem>>, vector<8x32xf32>,
    %c0_16 = arith.constant 0 : index
    %c12 = arith.constant 12 : index
    %22 = vector.load %arg1[%c0_16, %c12] : memref<8x16xf32, #tpu.memory_space<vmem>>, vector<8x4xf32>
    %23 = vector.extract_strided_slice %3 {offsets = [0, 0], sizes = [8, 4], strides = [1, 1]} : vector<8x8xf32> to vector<8x4xf32>
    %24 = tpu.concatenate %22, %23 in 1 : vector<8x4xf32>, vector<8x4xf32> -> vector<8x8xf32>
    %cst_17 = arith.constant dense<0.000000e+00> : vector<8x32xf32>
    %25 = tpu.matmul %24, %0, %cst_17 {dimension_numbers = #tpu.dot_dimension_numbers<[1], [0], [0], [1], [0, 0, 1, 1], [], []>} : vector<8x8xf32>, vector<8x32xf32>, vector<8x32xf32> -> vector<8x32xf32>
    %c3 = arith.constant 3 : index
    %c0_18 = arith.constant 0 : index
    %26 = vector.load %arg3[%c3, %c0_18] : memref<4x32xf32, #tpu.memory_space<vmem>>, vector<1x32xf32>
    %27 = vector.broadcast %26 : vector<1x32xf32> to vector<8x32xf32>
    %28 = arith.addf %25, %27 : vector<8x32xf32>
    %c0_19 = arith.constant 0 : index
    %c96 = arith.constant 96 : index
    %29 = vector.load %arg4[%c0_19, %c96] : memref<8x128xf32, #tpu.memory_space<vmem>>, vector<8x32xf32>
    tpu.vector_store %arg4[%c0_19, %c96], %28 {strides = array<i32>} : memref<8x128xf32, #tpu.memory_space<vmem>>, vector<8x32xf32>,
    return
  }
  func.func @transform_0(%arg0: i32) -> (i32, i32) {
    %c0_i32 = arith.constant 0 : i32
    %c0_i32_0 = arith.constant 0 : i32
    return %arg0, %c0_i32 : i32, i32
  }
  func.func @transform_1(%arg0: i32) -> (i32, i32) {
    %c0_i32 = arith.constant 0 : i32
    %c0_i32_0 = arith.constant 0 : i32
    %c0_i32_1 = arith.constant 0 : i32
    return %c0_i32, %c0_i32_0 : i32, i32
  }
  func.func @transform_2(%arg0: i32) -> (i32, i32) {
    %c0_i32 = arith.constant 0 : i32
    %c0_i32_0 = arith.constant 0 : i32
    %c0_i32_1 = arith.constant 0 : i32
    return %c0_i32, %c0_i32_0 : i32, i32
  }
  func.func @transform_3(%arg0: i32) -> (i32, i32) {
    %c0_i32 = arith.constant 0 : i32
    %c0_i32_0 = arith.constant 0 : i32
    return %arg0, %c0_i32 : i32, i32
  }
}

module attributes {stable_mosaic.version = 11 : i64} {
  func.func @_patch_embed_kernel(%arg0: i32, %arg1: memref<8x16xf32, #tpu.memory_space<vmem>>, %arg2: memref<8x32xf32, #tpu.memory_space<vmem>>, %arg3: memref<4x32xf32, #tpu.memory_space<vmem>>, %arg4: memref<8x128xf32, #tpu.memory_space<vmem>>) attributes {dimension_semantics = [#tpu.dimension_semantics<parallel>], iteration_bounds = array<i64: 1>, scalar_prefetch = 0 : i64, scratch_operands = 0 : i64, tpu.core_type = #tpu.core_type<tc>, window_params = [{transform_indices = @transform_0, window_bounds = array<i64: 8, 16>}, {pipeline_mode = #tpu.pipeline_mode<synchronous>, transform_indices = @transform_1, window_bounds = array<i64: 8, 32>}, {pipeline_mode = #tpu.pipeline_mode<synchronous>, transform_indices = @transform_2, window_bounds = array<i64: 4, 32>}, {transform_indices = @transform_3, window_bounds = array<i64: 8, 128>}]} {
    %c0 = arith.constant 0 : index
    %c0_0 = arith.constant 0 : index
    %0 = vector.load %arg2[%c0, %c0_0] : memref<8x32xf32, #tpu.memory_space<vmem>>, vector<8x32xf32>
    %c0_1 = arith.constant 0 : index
    %c15 = arith.constant 15 : index
    %1 = vector.load %arg1[%c0_1, %c15] : memref<8x16xf32, #tpu.memory_space<vmem>>, vector<8x1xf32>
    %2 = vector.shape_cast %1 : vector<8x1xf32> to vector<8x1xf32>
    %3 = vector.broadcast %2 : vector<8x1xf32> to vector<8x8xf32>
    %c0_2 = arith.constant 0 : index
    %c0_3 = arith.constant 0 : index
    %4 = vector.load %arg1[%c0_2, %c0_3] : memref<8x16xf32, #tpu.memory_space<vmem>>, vector<8x8xf32>
    %cst = arith.constant dense<0.000000e+00> : vector<8x32xf32>
    %5 = tpu.matmul %4, %0, %cst {dimension_numbers = #tpu.dot_dimension_numbers<[1], [0], [0], [1], [0, 0, 1, 1], [], []>} : vector<8x8xf32>, vector<8x32xf32>, vector<8x32xf32> -> vector<8x32xf32>
    %c0_4 = arith.constant 0 : index
    %c0_5 = arith.constant 0 : index
    %6 = vector.load %arg3[%c0_4, %c0_5] : memref<4x32xf32, #tpu.memory_space<vmem>>, vector<1x32xf32>
    %7 = vector.broadcast %6 : vector<1x32xf32> to vector<8x32xf32>
    %8 = arith.addf %5, %7 : vector<8x32xf32>
    %c0_6 = arith.constant 0 : index
    %c0_7 = arith.constant 0 : index
    %9 = vector.load %arg4[%c0_6, %c0_7] : memref<8x128xf32, #tpu.memory_space<vmem>>, vector<8x32xf32>
    tpu.vector_store %arg4[%c0_6, %c0_7], %8 {strides = array<i32>} : memref<8x128xf32, #tpu.memory_space<vmem>>, vector<8x32xf32>,
    %c0_8 = arith.constant 0 : index
    %c4 = arith.constant 4 : index
    %10 = vector.load %arg1[%c0_8, %c4] : memref<8x16xf32, #tpu.memory_space<vmem>>, vector<8x8xf32>
    %cst_9 = arith.constant dense<0.000000e+00> : vector<8x32xf32>
    %11 = tpu.matmul %10, %0, %cst_9 {dimension_numbers = #tpu.dot_dimension_numbers<[1], [0], [0], [1], [0, 0, 1, 1], [], []>} : vector<8x8xf32>, vector<8x32xf32>, vector<8x32xf32> -> vector<8x32xf32>
    %c1 = arith.constant 1 : index
    %c0_10 = arith.constant 0 : index
    %12 = vector.load %arg3[%c1, %c0_10] : memref<4x32xf32, #tpu.memory_space<vmem>>, vector<1x32xf32>
    %13 = vector.broadcast %12 : vector<1x32xf32> to vector<8x32xf32>
    %14 = arith.addf %11, %13 : vector<8x32xf32>
    %c0_11 = arith.constant 0 : index
    %c32 = arith.constant 32 : index
    %15 = vector.load %arg4[%c0_11, %c32] : memref<8x128xf32, #tpu.memory_space<vmem>>, vector<8x32xf32>
    tpu.vector_store %arg4[%c0_11, %c32], %14 {strides = array<i32>} : memref<8x128xf32, #tpu.memory_space<vmem>>, vector<8x32xf32>,
    %c0_12 = arith.constant 0 : index
    %c8 = arith.constant 8 : index
    %16 = vector.load %arg1[%c0_12, %c8] : memref<8x16xf32, #tpu.memory_space<vmem>>, vector<8x8xf32>
    %cst_13 = arith.constant dense<0.000000e+00> : vector<8x32xf32>
    %17 = tpu.matmul %16, %0, %cst_13 {dimension_numbers = #tpu.dot_dimension_numbers<[1], [0], [0], [1], [0, 0, 1, 1], [], []>} : vector<8x8xf32>, vector<8x32xf32>, vector<8x32xf32> -> vector<8x32xf32>
    %c2 = arith.constant 2 : index
    %c0_14 = arith.constant 0 : index
    %18 = vector.load %arg3[%c2, %c0_14] : memref<4x32xf32, #tpu.memory_space<vmem>>, vector<1x32xf32>
    %19 = vector.broadcast %18 : vector<1x32xf32> to vector<8x32xf32>
    %20 = arith.addf %17, %19 : vector<8x32xf32>
    %c0_15 = arith.constant 0 : index
    %c64 = arith.constant 64 : index
    %21 = vector.load %arg4[%c0_15, %c64] : memref<8x128xf32, #tpu.memory_space<vmem>>, vector<8x32xf32>
    tpu.vector_store %arg4[%c0_15, %c64], %20 {strides = array<i32>} : memref<8x128xf32, #tpu.memory_space<vmem>>, vector<8x32xf32>,
    %c0_16 = arith.constant 0 : index
    %c12 = arith.constant 12 : index
    %22 = vector.load %arg1[%c0_16, %c12] : memref<8x16xf32, #tpu.memory_space<vmem>>, vector<8x4xf32>
    %23 = vector.extract_strided_slice %3 {offsets = [0, 0], sizes = [8, 4], strides = [1, 1]} : vector<8x8xf32> to vector<8x4xf32>
    %24 = tpu.concatenate %22, %23 in 1 : vector<8x4xf32>, vector<8x4xf32> -> vector<8x8xf32>
    %cst_17 = arith.constant dense<0.000000e+00> : vector<8x32xf32>
    %25 = tpu.matmul %24, %0, %cst_17 {dimension_numbers = #tpu.dot_dimension_numbers<[1], [0], [0], [1], [0, 0, 1, 1], [], []>} : vector<8x8xf32>, vector<8x32xf32>, vector<8x32xf32> -> vector<8x32xf32>
    %c3 = arith.constant 3 : index
    %c0_18 = arith.constant 0 : index
    %26 = vector.load %arg3[%c3, %c0_18] : memref<4x32xf32, #tpu.memory_space<vmem>>, vector<1x32xf32>
    %27 = vector.broadcast %26 : vector<1x32xf32> to vector<8x32xf32>
    %28 = arith.addf %25, %27 : vector<8x32xf32>
    %c0_19 = arith.constant 0 : index
    %c96 = arith.constant 96 : index
    %29 = vector.load %arg4[%c0_19, %c96] : memref<8x128xf32, #tpu.memory_space<vmem>>, vector<8x32xf32>
    tpu.vector_store %arg4[%c0_19, %c96], %28 {strides = array<i32>} : memref<8x128xf32, #tpu.memory_space<vmem>>, vector<8x32xf32>,
    return
  }
  func.func @transform_0(%arg0: i32) -> (i32, i32) {
    %c0_i32 = arith.constant 0 : i32
    %c0_i32_0 = arith.constant 0 : i32
    return %arg0, %c0_i32 : i32, i32
  }
  func.func @transform_1(%arg0: i32) -> (i32, i32) {
    %c0_i32 = arith.constant 0 : i32
    %c0_i32_0 = arith.constant 0 : i32
    %c0_i32_1 = arith.constant 0 : i32
    return %c0_i32, %c0_i32_0 : i32, i32
  }
  func.func @transform_2(%arg0: i32) -> (i32, i32) {
    %c0_i32 = arith.constant 0 : i32
    %c0_i32_0 = arith.constant 0 : i32
    %c0_i32_1 = arith.constant 0 : i32
    return %c0_i32, %c0_i32_0 : i32, i32
  }
  func.func @transform_3(%arg0: i32) -> (i32, i32) {
    %c0_i32 = arith.constant 0 : i32
    %c0_i32_0 = arith.constant 0 : i32
    return %arg0, %c0_i32 : i32, i32
  }
}

</mosaic_0001>

<llo_original>
// kernel: tpu_custom_call.1
$region0: #{tpu_custom_call.1}
  #allocation0 [shape = 'u32[]', space=smem, size = 0x4, offset = 0x4, fixed_abs, tag = 'smem constant byte address 0x4 - core index']
  #allocation1 [shape = 'u32[144,128]{1,0:T(1,128)}', space=vmem, size = 0x12000, scoped, tag = 'internal scratch']
  %s0 = inlined_call_operand.hbm [shape: f32[8,16], index: 0, kind: input, shape index: {}]
  %s1 = inlined_call_operand.hbm [shape: f32[8,32], index: 1, kind: input, shape index: {}]
  %s2 = inlined_call_operand.vmem [shape: f32[4,32], index: 2, kind: input, shape index: {}]
  %s3 = inlined_call_operand.hbm [shape: f32[8,128], index: 3, kind: output, shape index: {}]
  %s4 = sld [smem:[#allocation0]]
  $region30: #{tpu_custom_call.1} parent=0
    _
  %s6 = ssub.s32 1, %s4
  %s7 = scalar_select 0, %s6, %s4
  $region1: #{tpu_custom_call.1} parent=0
    #allocation2 [shape = 'u8[4096]{0}', space=vmem, size = 0x1000, scoped, tag = 'input window, operand 0, single buffered']
    #allocation3 [shape = 's32[1]{0}', space=sflag, size = 0x4, scoped, tag = 'scoped memory for tpu_custom_call.1']
    #allocation4 [shape = 's32[1]{0}', space=sflag, size = 0x4, scoped, tag = 'scoped memory for tpu_custom_call.1']
    #allocation5 [shape = 'u8[4096]{0}', space=vmem, size = 0x1000, scoped, tag = 'input window, operand 1, single buffered']
    #allocation6 [shape = 's32[1]{0}', space=sflag, size = 0x4, scoped, tag = 'scoped memory for tpu_custom_call.1']
    #allocation7 [shape = 'u8[4096]{0}', space=vmem, size = 0x1000, scoped, tag = 'output window, operand 0, single buffered']
    %8 = vsyncpa [#allocation3], 0
    %9 = vsyncpa [#allocation6], 0
    %10 = vsyncpa [#allocation4], 0
    // Predicated region
    $region2: #{tpu_custom_call.1} parent=1 // pred_check
      _
    $region3: #{tpu_custom_call.1} parent=1 // pred_check_branch
      %12 = sbr.rel (0) target = $region5
    $region4: #{tpu_custom_call.1} parent=1 // pred_region
      %s14 = ssub.s32 128, 128
      %15 = vsyncadd [#allocation3], %s14
      %s17 = sshll.u32 [#allocation2], 4
      %s18 = int_to_ptr.vmem [resolvable:$true] %s17
      %20 = dma.hbm_to_vmem [thread:$0]  %s0, 128, %s18, [#allocation3]
    $region5: #{tpu_custom_call.1} parent=1 // pred_fallthru
      _
    // Predicated region
    $region6: #{tpu_custom_call.1} parent=1 // pred_check
      _
    $region7: #{tpu_custom_call.1} parent=1 // pred_check_branch
      %22 = sbr.rel (0) target = $region9
    $region8: #{tpu_custom_call.1} parent=1 // pred_region
      %s24 = ssub.s32 128, 128
      %25 = vsyncadd [#allocation6], %s24
      %s27 = sshll.u32 [#allocation5], 4
      %s28 = int_to_ptr.vmem [resolvable:$true] %s27
      %30 = dma.hbm_to_vmem [thread:$0]  %s1, 128, %s28, [#allocation6]
    $region9: #{tpu_custom_call.1} parent=1 // pred_fallthru
      _
    // Predicated region
    $region10: #{tpu_custom_call.1} parent=1 // pred_check
      _
    $region11: #{tpu_custom_call.1} parent=1 // pred_check_branch
      %32 = sbr.rel (0) target = $region13
    $region12: #{tpu_custom_call.1} parent=1 // pred_region
      _
    $region13: #{tpu_custom_call.1} parent=1 // pred_fallthru
      _
    // Predicated region
    $region14: #{tpu_custom_call.1} parent=1 // pred_check
      _
    $region15: #{tpu_custom_call.1} parent=1 // pred_check_branch
      %34 = sbr.rel (0) target = $region17
    $region16: #{tpu_custom_call.1} parent=1 // pred_region
      %35 = dma.done [#allocation3], 128
    $region17: #{tpu_custom_call.1} parent=1 // pred_fallthru
      _
    // Predicated region
    $region18: #{tpu_custom_call.1} parent=1 // pred_check
      _
    $region19: #{tpu_custom_call.1} parent=1 // pred_check_branch
      %37 = sbr.rel (0) target = $region21
    $region20: #{tpu_custom_call.1} parent=1 // pred_region
      %38 = dma.done [#allocation6], 128
    $region21: #{tpu_custom_call.1} parent=1 // pred_fallthru
      _
    %v39 = vld [vmem:[#allocation5] sm:$0xff]
    %v40 = vld [vmem:[#allocation2] sm:$0xff]
    %v41 = vld [vmem:[%s2] sm:$0x1]
    %v42 = vlaneseq
    %v43 = vshrl.u32 %v42, 7
    %v44 = vsub.s32 0, %v43
    %v45 = vrot.slane %v41, %v44
    %vm46 = vcmask 64512
    %v48 = vsel %vm46, %v40, 0
    %50 = vmatprep.subr.mxu0 0.0
    %51 = vmatpush1.msra.mxu0 %v39
    %52 = vmatprep.subr.mxu0 0.0
    %53 = vmatpush1.msra.mxu0 0.0
    %54 = vmatprep.subr.mxu0 0.0
    %55 = vmatpush1.msra.mxu0 0.0
    %56 = vmatprep.subr.mxu0 0.0
    %57 = vmatpush1.msra.mxu0 0.0
    %58 = vmatprep.subr.mxu0 0.0
    %59 = vmatpush1.msra.mxu0 0.0
    %60 = vmatprep.subr.mxu0 0.0
    %61 = vmatpush1.msra.mxu0 0.0
    %62 = vmatprep.subr.mxu0 0.0
    %63 = vmatpush1.msra.mxu0 0.0
    %64 = vmatprep.subr.mxu0 0.0
    %65 = vmatpush1.msra.mxu0 0.0
    %66 = vmatprep.subr.mxu0 0.0
    %67 = vmatpush1.msra.mxu0 0.0
    %68 = vmatprep.subr.mxu0 0.0
    %69 = vmatpush1.msra.mxu0 0.0
    %70 = vmatprep.subr.mxu0 0.0
    %71 = vmatpush1.msra.mxu0 0.0
    %72 = vmatprep.subr.mxu0 0.0
    %73 = vmatpush1.msra.mxu0 0.0
    %74 = vmatprep.subr.mxu0 0.0
    %75 = vmatpush1.msra.mxu0 0.0
    %76 = vmatprep.subr.mxu0 0.0
    %77 = vmatpush1.msra.mxu0 0.0
    %78 = vmatprep.subr.mxu0 0.0
    %79 = vmatpush1.msra.mxu0 0.0
    %80 = vmatprep.subr.mxu0 0.0
    %81 = vmatpush1.msra.mxu0 0.0
    %82 = vmatprep.subr.mxu0 0.0
    %83 = vmatpush1.msra.mxu0 0.0
    %84 = vmatprep.subr.mxu0 0.0
    %85 = vmatpush1.msra.mxu0 0.0
    %86 = vmatprep.subr.mxu0 0.0
    %87 = vmatpush1.msra.mxu0 0.0
    %88 = vmatprep.subr.mxu0 0.0
    %89 = vmatpush1.msra.mxu0 0.0
    %90 = vmatprep.subr.mxu0 0.0
    %91 = vmatpush1.msra.mxu0 0.0
    %92 = vmatprep.subr.mxu0 0.0
    %93 = vmatpush1.msra.mxu0 0.0
    %94 = vmatprep.subr.mxu0 0.0
    %95 = vmatpush1.msra.mxu0 0.0
    %96 = vmatprep.subr.mxu0 0.0
    %97 = vmatpush1.msra.mxu0 0.0
    %98 = vmatprep.subr.mxu0 0.0
    %99 = vmatpush1.msra.mxu0 0.0
    %100 = vmatprep.subr.mxu0 0.0
    %101 = vmatpush1.msra.mxu0 0.0
    %102 = vmatprep.subr.mxu0 0.0
    %103 = vmatpush1.msra.mxu0 0.0
    %104 = vmatprep.subr.mxu0 0.0
    %105 = vmatpush1.msra.mxu0 0.0
    %106 = vmatprep.subr.mxu0 0.0
    %107 = vmatpush1.msra.mxu0 0.0
    %108 = vmatprep.subr.mxu0 0.0
    %109 = vmatpush1.msra.mxu0 0.0
    %110 = vmatprep.subr.mxu0 0.0
    %111 = vmatpush1.msra.mxu0 0.0
    %112 = vmatprep.subr.mxu0 0.0
    %113 = vmatpush1.msra.mxu0 0.0
    %114 = vmatprep.mubr.f32.mxu0 0.0
    %115 = vmatmul.mubr.f32.gmra.mrb[0].mxu0 %v48
    %v116 = vpop.f32.mrb[0].mxu0
    %v117 = vadd.f32 %v45, %v116
    %v118 = vpop.f32.mrb[0].mxu0
    %119 = vdwg.mxu0
    %vm120 = vcmask 261120
    %121 = vst.msk [vmem:[#allocation7] sm:$0xff] %vm120, %v117
    %v122 = vld [vmem:[#allocation2] sm:$0xff]
    %v123 = vld [vmem:[%s2 + $0x1] sm:$0x1]
    %v124 = vlaneseq
    %v125 = vshrl.u32 %v124, 7
    %v126 = vsub.s32 0, %v125
    %v127 = vrot.slane %v123, %v126
    %129 = vrot.lane.b32.xlu0 %v122, 124
    %v130 = vpop.permute.xlu0 %129
    %v131 = vsel %vm46, %v130, 0
    %133 = vmatprep.subr.mxu0 0.0
    %134 = vmatpush1.msra.mxu0 %v39
    %135 = vmatprep.subr.mxu0 0.0
    %136 = vmatpush1.msra.mxu0 0.0
    %137 = vmatprep.subr.mxu0 0.0
    %138 = vmatpush1.msra.mxu0 0.0
    %139 = vmatprep.subr.mxu0 0.0
    %140 = vmatpush1.msra.mxu0 0.0
    %141 = vmatprep.subr.mxu0 0.0
    %142 = vmatpush1.msra.mxu0 0.0
    %143 = vmatprep.subr.mxu0 0.0
    %144 = vmatpush1.msra.mxu0 0.0
    %145 = vmatprep.subr.mxu0 0.0
    %146 = vmatpush1.msra.mxu0 0.0
    %147 = vmatprep.subr.mxu0 0.0
    %148 = vmatpush1.msra.mxu0 0.0
    %149 = vmatprep.subr.mxu0 0.0
    %150 = vmatpush1.msra.mxu0 0.0
    %151 = vmatprep.subr.mxu0 0.0
    %152 = vmatpush1.msra.mxu0 0.0
    %153 = vmatprep.subr.mxu0 0.0
    %154 = vmatpush1.msra.mxu0 0.0
    %155 = vmatprep.subr.mxu0 0.0
    %156 = vmatpush1.msra.mxu0 0.0
    %157 = vmatprep.subr.mxu0 0.0
    %158 = vmatpush1.msra.mxu0 0.0
    %159 = vmatprep.subr.mxu0 0.0
    %160 = vmatpush1.msra.mxu0 0.0
    %161 = vmatprep.subr.mxu0 0.0
    %162 = vmatpush1.msra.mxu0 0.0
    %163 = vmatprep.subr.mxu0 0.0
    %164 = vmatpush1.msra.mxu0 0.0
    %165 = vmatprep.subr.mxu0 0.0
    %166 = vmatpush1.msra.mxu0 0.0
    %167 = vmatprep.subr.mxu0 0.0
    %168 = vmatpush1.msra.mxu0 0.0
    %169 = vmatprep.subr.mxu0 0.0
    %170 = vmatpush1.msra.mxu0 0.0
    %171 = vmatprep.subr.mxu0 0.0
    %172 = vmatpush1.msra.mxu0 0.0
    %173 = vmatprep.subr.mxu0 0.0
    %174 = vmatpush1.msra.mxu0 0.0
    %175 = vmatprep.subr.mxu0 0.0
    %176 = vmatpush1.msra.mxu0 0.0
    %177 = vmatprep.subr.mxu0 0.0
    %178 = vmatpush1.msra.mxu0 0.0
    %179 = vmatprep.subr.mxu0 0.0
    %180 = vmatpush1.msra.mxu0 0.0
    %181 = vmatprep.subr.mxu0 0.0
    %182 = vmatpush1.msra.mxu0 0.0
    %183 = vmatprep.subr.mxu0 0.0
    %184 = vmatpush1.msra.mxu0 0.0
    %185 = vmatprep.subr.mxu0 0.0
    %186 = vmatpush1.msra.mxu0 0.0
    %187 = vmatprep.subr.mxu0 0.0
    %188 = vmatpush1.msra.mxu0 0.0
    %189 = vmatprep.subr.mxu0 0.0
    %190 = vmatpush1.msra.mxu0 0.0
    %191 = vmatprep.subr.mxu0 0.0
    %192 = vmatpush1.msra.mxu0 0.0
    %193 = vmatprep.subr.mxu0 0.0
    %194 = vmatpush1.msra.mxu0 0.0
    %195 = vmatprep.subr.mxu0 0.0
    %196 = vmatpush1.msra.mxu0 0.0
    %197 = vmatprep.mubr.f32.mxu0 0.0
    %198 = vmatmul.mubr.f32.gmra.mrb[0].mxu0 %v131
    %v199 = vpop.f32.mrb[0].mxu0
    %v200 = vadd.f32 %v127, %v199
    %v201 = vpop.f32.mrb[0].mxu0
    %202 = vdwg.mxu0
    %204 = vrot.lane.b32.xlu0 %v200, 32
    %v205 = vpop.permute.xlu0 %204
    %vm207 = vcmask 523520
    %208 = vst.msk [vmem:[#allocation7] sm:$0xff] %vm207, %v205
    %v209 = vld [vmem:[#allocation2] sm:$0xff]
    %v210 = vld [vmem:[%s2 + $0x2] sm:$0x1]
    %v211 = vlaneseq
    %v212 = vshrl.u32 %v211, 7
    %v213 = vsub.s32 0, %v212
    %v214 = vrot.slane %v210, %v213
    %216 = vrot.lane.b32.xlu0 %v209, 120
    %v217 = vpop.permute.xlu0 %216
    %v218 = vsel %vm46, %v217, 0
    %220 = vmatprep.subr.mxu0 0.0
    %221 = vmatpush1.msra.mxu0 %v39
    %222 = vmatprep.subr.mxu0 0.0
    %223 = vmatpush1.msra.mxu0 0.0
    %224 = vmatprep.subr.mxu0 0.0
    %225 = vmatpush1.msra.mxu0 0.0
    %226 = vmatprep.subr.mxu0 0.0
    %227 = vmatpush1.msra.mxu0 0.0
    %228 = vmatprep.subr.mxu0 0.0
    %229 = vmatpush1.msra.mxu0 0.0
    %230 = vmatprep.subr.mxu0 0.0
    %231 = vmatpush1.msra.mxu0 0.0
    %232 = vmatprep.subr.mxu0 0.0
    %233 = vmatpush1.msra.mxu0 0.0
    %234 = vmatprep.subr.mxu0 0.0
    %235 = vmatpush1.msra.mxu0 0.0
    %236 = vmatprep.subr.mxu0 0.0
    %237 = vmatpush1.msra.mxu0 0.0
    %238 = vmatprep.subr.mxu0 0.0
    %239 = vmatpush1.msra.mxu0 0.0
    %240 = vmatprep.subr.mxu0 0.0
    %241 = vmatpush1.msra.mxu0 0.0
    %242 = vmatprep.subr.mxu0 0.0
    %243 = vmatpush1.msra.mxu0 0.0
    %244 = vmatprep.subr.mxu0 0.0
    %245 = vmatpush1.msra.mxu0 0.0
    %246 = vmatprep.subr.mxu0 0.0
    %247 = vmatpush1.msra.mxu0 0.0
    %248 = vmatprep.subr.mxu0 0.0
    %249 = vmatpush1.msra.mxu0 0.0
    %250 = vmatprep.subr.mxu0 0.0
    %251 = vmatpush1.msra.mxu0 0.0
    %252 = vmatprep.subr.mxu0 0.0
    %253 = vmatpush1.msra.mxu0 0.0
    %254 = vmatprep.subr.mxu0 0.0
    %255 = vmatpush1.msra.mxu0 0.0
    %256 = vmatprep.subr.mxu0 0.0
    %257 = vmatpush1.msra.mxu0 0.0
    %258 = vmatprep.subr.mxu0 0.0
    %259 = vmatpush1.msra.mxu0 0.0
    %260 = vmatprep.subr.mxu0 0.0
    %261 = vmatpush1.msra.mxu0 0.0
    %262 = vmatprep.subr.mxu0 0.0
    %263 = vmatpush1.msra.mxu0 0.0
    %264 = vmatprep.subr.mxu0 0.0
    %265 = vmatpush1.msra.mxu0 0.0
    %266 = vmatprep.subr.mxu0 0.0
    %267 = vmatpush1.msra.mxu0 0.0
    %268 = vmatprep.subr.mxu0 0.0
    %269 = vmatpush1.msra.mxu0 0.0
    %270 = vmatprep.subr.mxu0 0.0
    %271 = vmatpush1.msra.mxu0 0.0
    %272 = vmatprep.subr.mxu0 0.0
    %273 = vmatpush1.msra.mxu0 0.0
    %274 = vmatprep.subr.mxu0 0.0
    %275 = vmatpush1.msra.mxu0 0.0
    %276 = vmatprep.subr.mxu0 0.0
    %277 = vmatpush1.msra.mxu0 0.0
    %278 = vmatprep.subr.mxu0 0.0
    %279 = vmatpush1.msra.mxu0 0.0
    %280 = vmatprep.subr.mxu0 0.0
    %281 = vmatpush1.msra.mxu0 0.0
    %282 = vmatprep.subr.mxu0 0.0
    %283 = vmatpush1.msra.mxu0 0.0
    %284 = vmatprep.mubr.f32.mxu0 0.0
    %285 = vmatmul.mubr.f32.gmra.mrb[0].mxu0 %v218
    %v286 = vpop.f32.mrb[0].mxu0
    %v287 = vadd.f32 %v214, %v286
    %v288 = vpop.f32.mrb[0].mxu0
    %289 = vdwg.mxu0
    %291 = vrot.lane.b32.xlu0 %v287, 64
    %v292 = vpop.permute.xlu0 %291
    %vm294 = vcmask 785920
    %295 = vst.msk [vmem:[#allocation7] sm:$0xff] %vm294, %v292
    %v296 = vld [vmem:[#allocation2] sm:$0xff]
    %297 = vset.pattern.permute.xlu0 15
    %298 = vperm.xlu0 %297, %v40
    %v299 = vpop.permute.xlu0 %298
    %302 = vrot.lane.b32.xlu0 %v296, 116
    %v303 = vpop.permute.xlu0 %302
    %vm305 = vcmask 31744
    %v306 = vsel %vm305, %v303, %v299
    %v307 = vld [vmem:[%s2 + $0x3] sm:$0x1]
    %v308 = vlaneseq
    %v309 = vshrl.u32 %v308, 7
    %v310 = vsub.s32 0, %v309
    %v311 = vrot.slane %v307, %v310
    %v313 = vsel %vm46, %v306, 0
    %315 = vmatprep.subr.mxu0 0.0
    %316 = vmatpush1.msra.mxu0 %v39
    %317 = vmatprep.subr.mxu0 0.0
    %318 = vmatpush1.msra.mxu0 0.0
    %319 = vmatprep.subr.mxu0 0.0
    %320 = vmatpush1.msra.mxu0 0.0
    %321 = vmatprep.subr.mxu0 0.0
    %322 = vmatpush1.msra.mxu0 0.0
    %323 = vmatprep.subr.mxu0 0.0
    %324 = vmatpush1.msra.mxu0 0.0
    %325 = vmatprep.subr.mxu0 0.0
    %326 = vmatpush1.msra.mxu0 0.0
    %327 = vmatprep.subr.mxu0 0.0
    %328 = vmatpush1.msra.mxu0 0.0
    %329 = vmatprep.subr.mxu0 0.0
    %330 = vmatpush1.msra.mxu0 0.0
    %331 = vmatprep.subr.mxu0 0.0
    %332 = vmatpush1.msra.mxu0 0.0
    %333 = vmatprep.subr.mxu0 0.0
    %334 = vmatpush1.msra.mxu0 0.0
    %335 = vmatprep.subr.mxu0 0.0
    %336 = vmatpush1.msra.mxu0 0.0
    %337 = vmatprep.subr.mxu0 0.0
    %338 = vmatpush1.msra.mxu0 0.0
    %339 = vmatprep.subr.mxu0 0.0
    %340 = vmatpush1.msra.mxu0 0.0
    %341 = vmatprep.subr.mxu0 0.0
    %342 = vmatpush1.msra.mxu0 0.0
    %343 = vmatprep.subr.mxu0 0.0
    %344 = vmatpush1.msra.mxu0 0.0
    %345 = vmatprep.subr.mxu0 0.0
    %346 = vmatpush1.msra.mxu0 0.0
    %347 = vmatprep.subr.mxu0 0.0
    %348 = vmatpush1.msra.mxu0 0.0
    %349 = vmatprep.subr.mxu0 0.0
    %350 = vmatpush1.msra.mxu0 0.0
    %351 = vmatprep.subr.mxu0 0.0
    %352 = vmatpush1.msra.mxu0 0.0
    %353 = vmatprep.subr.mxu0 0.0
    %354 = vmatpush1.msra.mxu0 0.0
    %355 = vmatprep.subr.mxu0 0.0
    %356 = vmatpush1.msra.mxu0 0.0
    %357 = vmatprep.subr.mxu0 0.0
    %358 = vmatpush1.msra.mxu0 0.0
    %359 = vmatprep.subr.mxu0 0.0
    %360 = vmatpush1.msra.mxu0 0.0
    %361 = vmatprep.subr.mxu0 0.0
    %362 = vmatpush1.msra.mxu0 0.0
    %363 = vmatprep.subr.mxu0 0.0
    %364 = vmatpush1.msra.mxu0 0.0
    %365 = vmatprep.subr.mxu0 0.0
    %366 = vmatpush1.msra.mxu0 0.0
    %367 = vmatprep.subr.mxu0 0.0
    %368 = vmatpush1.msra.mxu0 0.0
    %369 = vmatprep.subr.mxu0 0.0
    %370 = vmatpush1.msra.mxu0 0.0
    %371 = vmatprep.subr.mxu0 0.0
    %372 = vmatpush1.msra.mxu0 0.0
    %373 = vmatprep.subr.mxu0 0.0
    %374 = vmatpush1.msra.mxu0 0.0
    %375 = vmatprep.subr.mxu0 0.0
    %376 = vmatpush1.msra.mxu0 0.0
    %377 = vmatprep.subr.mxu0 0.0
    %378 = vmatpush1.msra.mxu0 0.0
    %379 = vmatprep.mubr.f32.mxu0 0.0
    %380 = vmatmul.mubr.f32.gmra.mrb[0].mxu0 %v313
    %v381 = vpop.f32.mrb[0].mxu0
    %v382 = vadd.f32 %v311, %v381
    %v383 = vpop.f32.mrb[0].mxu0
    %384 = vdwg.mxu0
    %386 = vrot.lane.b32.xlu0 %v382, 96
    %v387 = vpop.permute.xlu0 %386
    %vm389 = vcmask 1048320
    %390 = vst.msk [vmem:[#allocation7] sm:$0xff] %vm389, %v387
    // Predicated region
    $region22: #{tpu_custom_call.1} parent=1 // pred_check
      _
    $region23: #{tpu_custom_call.1} parent=1 // pred_check_branch
      %392 = sbr.rel (0) target = $region25
    $region24: #{tpu_custom_call.1} parent=1 // pred_region
      %s394 = ssub.s32 128, 128
      %395 = vsyncadd [#allocation4], %s394
      %s397 = sshll.u32 [#allocation7], 4
      %s398 = int_to_ptr.vmem [resolvable:$true] %s397
      %400 = dma.vmem_to_hbm [thread:$0]  %s398, 128, %s3, [#allocation4]
    $region25: #{tpu_custom_call.1} parent=1 // pred_fallthru
      _
    // Predicated region
    $region26: #{tpu_custom_call.1} parent=1 // pred_check
      _
    $region27: #{tpu_custom_call.1} parent=1 // pred_check_branch
      %402 = sbr.rel (0) target = $region29
    $region28: #{tpu_custom_call.1} parent=1 // pred_region
      %403 = dma.done [#allocation4], 128
    $region29: #{tpu_custom_call.1} parent=1 // pred_fallthru
      _
    %404 = vsyncpa [#allocation3], 1
    %405 = vsyncpa [#allocation6], 1
    %406 = vsyncpa [#allocation4], 1

// kernel: tpu_custom_call.1
$region0: #{tpu_custom_call.1}
  #allocation0 [shape = 'u32[]', space=smem, size = 0x4, offset = 0x4, fixed_abs, tag = 'smem constant byte address 0x4 - core index']
  #allocation1 [shape = 'u32[144,128]{1,0:T(1,128)}', space=vmem, size = 0x12000, scoped, tag = 'internal scratch']
  %s0 = inlined_call_operand.hbm [shape: f32[8,16], index: 0, kind: input, shape index: {}]
  %s1 = inlined_call_operand.hbm [shape: f32[8,32], index: 1, kind: input, shape index: {}]
  %s2 = inlined_call_operand.vmem [shape: f32[4,32], index: 2, kind: input, shape index: {}]
  %s3 = inlined_call_operand.hbm [shape: f32[8,128], index: 3, kind: output, shape index: {}]
  %s4 = sld [smem:[#allocation0]]
  $region30: #{tpu_custom_call.1} parent=0
    _
  %s6 = ssub.s32 1, %s4
  %s7 = scalar_select 0, %s6, %s4
  $region1: #{tpu_custom_call.1} parent=0
    #allocation2 [shape = 'u8[4096]{0}', space=vmem, size = 0x1000, scoped, tag = 'input window, operand 0, single buffered']
    #allocation3 [shape = 's32[1]{0}', space=sflag, size = 0x4, scoped, tag = 'scoped memory for tpu_custom_call.1']
    #allocation4 [shape = 's32[1]{0}', space=sflag, size = 0x4, scoped, tag = 'scoped memory for tpu_custom_call.1']
    #allocation5 [shape = 'u8[4096]{0}', space=vmem, size = 0x1000, scoped, tag = 'input window, operand 1, single buffered']
    #allocation6 [shape = 's32[1]{0}', space=sflag, size = 0x4, scoped, tag = 'scoped memory for tpu_custom_call.1']
    #allocation7 [shape = 'u8[4096]{0}', space=vmem, size = 0x1000, scoped, tag = 'output window, operand 0, single buffered']
    %8 = vsyncpa [#allocation3], 0
    %9 = vsyncpa [#allocation6], 0
    %10 = vsyncpa [#allocation4], 0
    // Predicated region
    $region2: #{tpu_custom_call.1} parent=1 // pred_check
      _
    $region3: #{tpu_custom_call.1} parent=1 // pred_check_branch
      %12 = sbr.rel (0) target = $region5
    $region4: #{tpu_custom_call.1} parent=1 // pred_region
      %s14 = ssub.s32 128, 128
      %15 = vsyncadd [#allocation3], %s14
      %s17 = sshll.u32 [#allocation2], 4
      %s18 = int_to_ptr.vmem [resolvable:$true] %s17
      %20 = dma.hbm_to_vmem [thread:$0]  %s0, 128, %s18, [#allocation3]
    $region5: #{tpu_custom_call.1} parent=1 // pred_fallthru
      _
    // Predicated region
    $region6: #{tpu_custom_call.1} parent=1 // pred_check
      _
    $region7: #{tpu_custom_call.1} parent=1 // pred_check_branch
      %22 = sbr.rel (0) target = $region9
    $region8: #{tpu_custom_call.1} parent=1 // pred_region
      %s24 = ssub.s32 128, 128
      %25 = vsyncadd [#allocation6], %s24
      %s27 = sshll.u32 [#allocation5], 4
      %s28 = int_to_ptr.vmem [resolvable:$true] %s27
      %30 = dma.hbm_to_vmem [thread:$0]  %s1, 128, %s28, [#allocation6]
    $region9: #{tpu_custom_call.1} parent=1 // pred_fallthru
      _
    // Predicated region
    $region10: #{tpu_custom_call.1} parent=1 // pred_check
      _
    $region11: #{tpu_custom_call.1} parent=1 // pred_check_branch
      %32 = sbr.rel (0) target = $region13
    $region12: #{tpu_custom_call.1} parent=1 // pred_region
      _
    $region13: #{tpu_custom_call.1} parent=1 // pred_fallthru
      _
    // Predicated region
    $region14: #{tpu_custom_call.1} parent=1 // pred_check
      _
    $region15: #{tpu_custom_call.1} parent=1 // pred_check_branch
      %34 = sbr.rel (0) target = $region17
    $region16: #{tpu_custom_call.1} parent=1 // pred_region
      %35 = dma.done [#allocation3], 128
    $region17: #{tpu_custom_call.1} parent=1 // pred_fallthru
      _
    // Predicated region
    $region18: #{tpu_custom_call.1} parent=1 // pred_check
      _
    $region19: #{tpu_custom_call.1} parent=1 // pred_check_branch
      %37 = sbr.rel (0) target = $region21
    $region20: #{tpu_custom_call.1} parent=1 // pred_region
      %38 = dma.done [#allocation6], 128
    $region21: #{tpu_custom_call.1} parent=1 // pred_fallthru
      _
    %v39 = vld [vmem:[#allocation5] sm:$0xff]
    %v40 = vld [vmem:[#allocation2] sm:$0xff]
    %v41 = vld [vmem:[%s2] sm:$0x1]
    %v42 = vlaneseq
    %v43 = vshrl.u32 %v42, 7
    %v44 = vsub.s32 0, %v43
    %v45 = vrot.slane %v41, %v44
    %vm46 = vcmask 64512
    %v48 = vsel %vm46, %v40, 0
    %50 = vmatprep.subr.mxu0 0.0
    %51 = vmatpush1.msra.mxu0 %v39
    %52 = vmatprep.subr.mxu0 0.0
    %53 = vmatpush1.msra.mxu0 0.0
    %54 = vmatprep.subr.mxu0 0.0
    %55 = vmatpush1.msra.mxu0 0.0
    %56 = vmatprep.subr.mxu0 0.0
    %57 = vmatpush1.msra.mxu0 0.0
    %58 = vmatprep.subr.mxu0 0.0
    %59 = vmatpush1.msra.mxu0 0.0
    %60 = vmatprep.subr.mxu0 0.0
    %61 = vmatpush1.msra.mxu0 0.0
    %62 = vmatprep.subr.mxu0 0.0
    %63 = vmatpush1.msra.mxu0 0.0
    %64 = vmatprep.subr.mxu0 0.0
    %65 = vmatpush1.msra.mxu0 0.0
    %66 = vmatprep.subr.mxu0 0.0
    %67 = vmatpush1.msra.mxu0 0.0
    %68 = vmatprep.subr.mxu0 0.0
    %69 = vmatpush1.msra.mxu0 0.0
    %70 = vmatprep.subr.mxu0 0.0
    %71 = vmatpush1.msra.mxu0 0.0
    %72 = vmatprep.subr.mxu0 0.0
    %73 = vmatpush1.msra.mxu0 0.0
    %74 = vmatprep.subr.mxu0 0.0
    %75 = vmatpush1.msra.mxu0 0.0
    %76 = vmatprep.subr.mxu0 0.0
    %77 = vmatpush1.msra.mxu0 0.0
    %78 = vmatprep.subr.mxu0 0.0
    %79 = vmatpush1.msra.mxu0 0.0
    %80 = vmatprep.subr.mxu0 0.0
    %81 = vmatpush1.msra.mxu0 0.0
    %82 = vmatprep.subr.mxu0 0.0
    %83 = vmatpush1.msra.mxu0 0.0
    %84 = vmatprep.subr.mxu0 0.0
    %85 = vmatpush1.msra.mxu0 0.0
    %86 = vmatprep.subr.mxu0 0.0
    %87 = vmatpush1.msra.mxu0 0.0
    %88 = vmatprep.subr.mxu0 0.0
    %89 = vmatpush1.msra.mxu0 0.0
    %90 = vmatprep.subr.mxu0 0.0
    %91 = vmatpush1.msra.mxu0 0.0
    %92 = vmatprep.subr.mxu0 0.0
    %93 = vmatpush1.msra.mxu0 0.0
    %94 = vmatprep.subr.mxu0 0.0
    %95 = vmatpush1.msra.mxu0 0.0
    %96 = vmatprep.subr.mxu0 0.0
    %97 = vmatpush1.msra.mxu0 0.0
    %98 = vmatprep.subr.mxu0 0.0
    %99 = vmatpush1.msra.mxu0 0.0
    %100 = vmatprep.subr.mxu0 0.0
    %101 = vmatpush1.msra.mxu0 0.0
    %102 = vmatprep.subr.mxu0 0.0
    %103 = vmatpush1.msra.mxu0 0.0
    %104 = vmatprep.subr.mxu0 0.0
    %105 = vmatpush1.msra.mxu0 0.0
    %106 = vmatprep.subr.mxu0 0.0
    %107 = vmatpush1.msra.mxu0 0.0
    %108 = vmatprep.subr.mxu0 0.0
    %109 = vmatpush1.msra.mxu0 0.0
    %110 = vmatprep.subr.mxu0 0.0
    %111 = vmatpush1.msra.mxu0 0.0
    %112 = vmatprep.subr.mxu0 0.0
    %113 = vmatpush1.msra.mxu0 0.0
    %114 = vmatprep.mubr.f32.mxu0 0.0
    %115 = vmatmul.mubr.f32.gmra.mrb[0].mxu0 %v48
    %v116 = vpop.f32.mrb[0].mxu0
    %v117 = vadd.f32 %v45, %v116
    %v118 = vpop.f32.mrb[0].mxu0
    %119 = vdwg.mxu0
    %vm120 = vcmask 261120
    %121 = vst.msk [vmem:[#allocation7] sm:$0xff] %vm120, %v117
    %v122 = vld [vmem:[#allocation2] sm:$0xff]
    %v123 = vld [vmem:[%s2 + $0x1] sm:$0x1]
    %v124 = vlaneseq
    %v125 = vshrl.u32 %v124, 7
    %v126 = vsub.s32 0, %v125
    %v127 = vrot.slane %v123, %v126
    %129 = vrot.lane.b32.xlu0 %v122, 124
    %v130 = vpop.permute.xlu0 %129
    %v131 = vsel %vm46, %v130, 0
    %133 = vmatprep.subr.mxu0 0.0
    %134 = vmatpush1.msra.mxu0 %v39
    %135 = vmatprep.subr.mxu0 0.0
    %136 = vmatpush1.msra.mxu0 0.0
    %137 = vmatprep.subr.mxu0 0.0
    %138 = vmatpush1.msra.mxu0 0.0
    %139 = vmatprep.subr.mxu0 0.0
    %140 = vmatpush1.msra.mxu0 0.0
    %141 = vmatprep.subr.mxu0 0.0
    %142 = vmatpush1.msra.mxu0 0.0
    %143 = vmatprep.subr.mxu0 0.0
    %144 = vmatpush1.msra.mxu0 0.0
    %145 = vmatprep.subr.mxu0 0.0
    %146 = vmatpush1.msra.mxu0 0.0
    %147 = vmatprep.subr.mxu0 0.0
    %148 = vmatpush1.msra.mxu0 0.0
    %149 = vmatprep.subr.mxu0 0.0
    %150 = vmatpush1.msra.mxu0 0.0
    %151 = vmatprep.subr.mxu0 0.0
    %152 = vmatpush1.msra.mxu0 0.0
    %153 = vmatprep.subr.mxu0 0.0
    %154 = vmatpush1.msra.mxu0 0.0
    %155 = vmatprep.subr.mxu0 0.0
    %156 = vmatpush1.msra.mxu0 0.0
    %157 = vmatprep.subr.mxu0 0.0
    %158 = vmatpush1.msra.mxu0 0.0
    %159 = vmatprep.subr.mxu0 0.0
    %160 = vmatpush1.msra.mxu0 0.0
    %161 = vmatprep.subr.mxu0 0.0
    %162 = vmatpush1.msra.mxu0 0.0
    %163 = vmatprep.subr.mxu0 0.0
    %164 = vmatpush1.msra.mxu0 0.0
    %165 = vmatprep.subr.mxu0 0.0
    %166 = vmatpush1.msra.mxu0 0.0
    %167 = vmatprep.subr.mxu0 0.0
    %168 = vmatpush1.msra.mxu0 0.0
    %169 = vmatprep.subr.mxu0 0.0
    %170 = vmatpush1.msra.mxu0 0.0
    %171 = vmatprep.subr.mxu0 0.0
    %172 = vmatpush1.msra.mxu0 0.0
    %173 = vmatprep.subr.mxu0 0.0
    %174 = vmatpush1.msra.mxu0 0.0
    %175 = vmatprep.subr.mxu0 0.0
    %176 = vmatpush1.msra.mxu0 0.0
    %177 = vmatprep.subr.mxu0 0.0
    %178 = vmatpush1.msra.mxu0 0.0
    %179 = vmatprep.subr.mxu0 0.0
    %180 = vmatpush1.msra.mxu0 0.0
    %181 = vmatprep.subr.mxu0 0.0
    %182 = vmatpush1.msra.mxu0 0.0
    %183 = vmatprep.subr.mxu0 0.0
    %184 = vmatpush1.msra.mxu0 0.0
    %185 = vmatprep.subr.mxu0 0.0
    %186 = vmatpush1.msra.mxu0 0.0
    %187 = vmatprep.subr.mxu0 0.0
    %188 = vmatpush1.msra.mxu0 0.0
    %189 = vmatprep.subr.mxu0 0.0
    %190 = vmatpush1.msra.mxu0 0.0
    %191 = vmatprep.subr.mxu0 0.0
    %192 = vmatpush1.msra.mxu0 0.0
    %193 = vmatprep.subr.mxu0 0.0
    %194 = vmatpush1.msra.mxu0 0.0
    %195 = vmatprep.subr.mxu0 0.0
    %196 = vmatpush1.msra.mxu0 0.0
    %197 = vmatprep.mubr.f32.mxu0 0.0
    %198 = vmatmul.mubr.f32.gmra.mrb[0].mxu0 %v131
    %v199 = vpop.f32.mrb[0].mxu0
    %v200 = vadd.f32 %v127, %v199
    %v201 = vpop.f32.mrb[0].mxu0
    %202 = vdwg.mxu0
    %204 = vrot.lane.b32.xlu0 %v200, 32
    %v205 = vpop.permute.xlu0 %204
    %vm207 = vcmask 523520
    %208 = vst.msk [vmem:[#allocation7] sm:$0xff] %vm207, %v205
    %v209 = vld [vmem:[#allocation2] sm:$0xff]
    %v210 = vld [vmem:[%s2 + $0x2] sm:$0x1]
    %v211 = vlaneseq
    %v212 = vshrl.u32 %v211, 7
    %v213 = vsub.s32 0, %v212
    %v214 = vrot.slane %v210, %v213
    %216 = vrot.lane.b32.xlu0 %v209, 120
    %v217 = vpop.permute.xlu0 %216
    %v218 = vsel %vm46, %v217, 0
    %220 = vmatprep.subr.mxu0 0.0
    %221 = vmatpush1.msra.mxu0 %v39
    %222 = vmatprep.subr.mxu0 0.0
    %223 = vmatpush1.msra.mxu0 0.0
    %224 = vmatprep.subr.mxu0 0.0
    %225 = vmatpush1.msra.mxu0 0.0
    %226 = vmatprep.subr.mxu0 0.0
    %227 = vmatpush1.msra.mxu0 0.0
    %228 = vmatprep.subr.mxu0 0.0
    %229 = vmatpush1.msra.mxu0 0.0
    %230 = vmatprep.subr.mxu0 0.0
    %231 = vmatpush1.msra.mxu0 0.0
    %232 = vmatprep.subr.mxu0 0.0
    %233 = vmatpush1.msra.mxu0 0.0
    %234 = vmatprep.subr.mxu0 0.0
    %235 = vmatpush1.msra.mxu0 0.0
    %236 = vmatprep.subr.mxu0 0.0
    %237 = vmatpush1.msra.mxu0 0.0
    %238 = vmatprep.subr.mxu0 0.0
    %239 = vmatpush1.msra.mxu0 0.0
    %240 = vmatprep.subr.mxu0 0.0
    %241 = vmatpush1.msra.mxu0 0.0
    %242 = vmatprep.subr.mxu0 0.0
    %243 = vmatpush1.msra.mxu0 0.0
    %244 = vmatprep.subr.mxu0 0.0
    %245 = vmatpush1.msra.mxu0 0.0
    %246 = vmatprep.subr.mxu0 0.0
    %247 = vmatpush1.msra.mxu0 0.0
    %248 = vmatprep.subr.mxu0 0.0
    %249 = vmatpush1.msra.mxu0 0.0
    %250 = vmatprep.subr.mxu0 0.0
    %251 = vmatpush1.msra.mxu0 0.0
    %252 = vmatprep.subr.mxu0 0.0
    %253 = vmatpush1.msra.mxu0 0.0
    %254 = vmatprep.subr.mxu0 0.0
    %255 = vmatpush1.msra.mxu0 0.0
    %256 = vmatprep.subr.mxu0 0.0
    %257 = vmatpush1.msra.mxu0 0.0
    %258 = vmatprep.subr.mxu0 0.0
    %259 = vmatpush1.msra.mxu0 0.0
    %260 = vmatprep.subr.mxu0 0.0
    %261 = vmatpush1.msra.mxu0 0.0
    %262 = vmatprep.subr.mxu0 0.0
    %263 = vmatpush1.msra.mxu0 0.0
    %264 = vmatprep.subr.mxu0 0.0
    %265 = vmatpush1.msra.mxu0 0.0
    %266 = vmatprep.subr.mxu0 0.0
    %267 = vmatpush1.msra.mxu0 0.0
    %268 = vmatprep.subr.mxu0 0.0
    %269 = vmatpush1.msra.mxu0 0.0
    %270 = vmatprep.subr.mxu0 0.0
    %271 = vmatpush1.msra.mxu0 0.0
    %272 = vmatprep.subr.mxu0 0.0
    %273 = vmatpush1.msra.mxu0 0.0
    %274 = vmatprep.subr.mxu0 0.0
    %275 = vmatpush1.msra.mxu0 0.0
    %276 = vmatprep.subr.mxu0 0.0
    %277 = vmatpush1.msra.mxu0 0.0
    %278 = vmatprep.subr.mxu0 0.0
    %279 = vmatpush1.msra.mxu0 0.0
    %280 = vmatprep.subr.mxu0 0.0
    %281 = vmatpush1.msra.mxu0 0.0
    %282 = vmatprep.subr.mxu0 0.0
    %283 = vmatpush1.msra.mxu0 0.0
    %284 = vmatprep.mubr.f32.mxu0 0.0
    %285 = vmatmul.mubr.f32.gmra.mrb[0].mxu0 %v218
    %v286 = vpop.f32.mrb[0].mxu0
    %v287 = vadd.f32 %v214, %v286
    %v288 = vpop.f32.mrb[0].mxu0
    %289 = vdwg.mxu0
    %291 = vrot.lane.b32.xlu0 %v287, 64
    %v292 = vpop.permute.xlu0 %291
    %vm294 = vcmask 785920
    %295 = vst.msk [vmem:[#allocation7] sm:$0xff] %vm294, %v292
    %v296 = vld [vmem:[#allocation2] sm:$0xff]
    %297 = vset.pattern.permute.xlu0 15
    %298 = vperm.xlu0 %297, %v40
    %v299 = vpop.permute.xlu0 %298
    %302 = vrot.lane.b32.xlu0 %v296, 116
    %v303 = vpop.permute.xlu0 %302
    %vm305 = vcmask 31744
    %v306 = vsel %vm305, %v303, %v299
    %v307 = vld [vmem:[%s2 + $0x3] sm:$0x1]
    %v308 = vlaneseq
    %v309 = vshrl.u32 %v308, 7
    %v310 = vsub.s32 0, %v309
    %v311 = vrot.slane %v307, %v310
    %v313 = vsel %vm46, %v306, 0
    %315 = vmatprep.subr.mxu0 0.0
    %316 = vmatpush1.msra.mxu0 %v39
    %317 = vmatprep.subr.mxu0 0.0
    %318 = vmatpush1.msra.mxu0 0.0
    %319 = vmatprep.subr.mxu0 0.0
    %320 = vmatpush1.msra.mxu0 0.0
    %321 = vmatprep.subr.mxu0 0.0
    %322 = vmatpush1.msra.mxu0 0.0
    %323 = vmatprep.subr.mxu0 0.0
    %324 = vmatpush1.msra.mxu0 0.0
    %325 = vmatprep.subr.mxu0 0.0
    %326 = vmatpush1.msra.mxu0 0.0
    %327 = vmatprep.subr.mxu0 0.0
    %328 = vmatpush1.msra.mxu0 0.0
    %329 = vmatprep.subr.mxu0 0.0
    %330 = vmatpush1.msra.mxu0 0.0
    %331 = vmatprep.subr.mxu0 0.0
    %332 = vmatpush1.msra.mxu0 0.0
    %333 = vmatprep.subr.mxu0 0.0
    %334 = vmatpush1.msra.mxu0 0.0
    %335 = vmatprep.subr.mxu0 0.0
    %336 = vmatpush1.msra.mxu0 0.0
    %337 = vmatprep.subr.mxu0 0.0
    %338 = vmatpush1.msra.mxu0 0.0
    %339 = vmatprep.subr.mxu0 0.0
    %340 = vmatpush1.msra.mxu0 0.0
    %341 = vmatprep.subr.mxu0 0.0
    %342 = vmatpush1.msra.mxu0 0.0
    %343 = vmatprep.subr.mxu0 0.0
    %344 = vmatpush1.msra.mxu0 0.0
    %345 = vmatprep.subr.mxu0 0.0
    %346 = vmatpush1.msra.mxu0 0.0
    %347 = vmatprep.subr.mxu0 0.0
    %348 = vmatpush1.msra.mxu0 0.0
    %349 = vmatprep.subr.mxu0 0.0
    %350 = vmatpush1.msra.mxu0 0.0
    %351 = vmatprep.subr.mxu0 0.0
    %352 = vmatpush1.msra.mxu0 0.0
    %353 = vmatprep.subr.mxu0 0.0
    %354 = vmatpush1.msra.mxu0 0.0
    %355 = vmatprep.subr.mxu0 0.0
    %356 = vmatpush1.msra.mxu0 0.0
    %357 = vmatprep.subr.mxu0 0.0
    %358 = vmatpush1.msra.mxu0 0.0
    %359 = vmatprep.subr.mxu0 0.0
    %360 = vmatpush1.msra.mxu0 0.0
    %361 = vmatprep.subr.mxu0 0.0
    %362 = vmatpush1.msra.mxu0 0.0
    %363 = vmatprep.subr.mxu0 0.0
    %364 = vmatpush1.msra.mxu0 0.0
    %365 = vmatprep.subr.mxu0 0.0
    %366 = vmatpush1.msra.mxu0 0.0
    %367 = vmatprep.subr.mxu0 0.0
    %368 = vmatpush1.msra.mxu0 0.0
    %369 = vmatprep.subr.mxu0 0.0
    %370 = vmatpush1.msra.mxu0 0.0
    %371 = vmatprep.subr.mxu0 0.0
    %372 = vmatpush1.msra.mxu0 0.0
    %373 = vmatprep.subr.mxu0 0.0
    %374 = vmatpush1.msra.mxu0 0.0
    %375 = vmatprep.subr.mxu0 0.0
    %376 = vmatpush1.msra.mxu0 0.0
    %377 = vmatprep.subr.mxu0 0.0
    %378 = vmatpush1.msra.mxu0 0.0
    %379 = vmatprep.mubr.f32.mxu0 0.0
    %380 = vmatmul.mubr.f32.gmra.mrb[0].mxu0 %v313
    %v381 = vpop.f32.mrb[0].mxu0
    %v382 = vadd.f32 %v311, %v381
    %v383 = vpop.f32.mrb[0].mxu0
    %384 = vdwg.mxu0
    %386 = vrot.lane.b32.xlu0 %v382, 96
    %v387 = vpop.permute.xlu0 %386
    %vm389 = vcmask 1048320
    %390 = vst.msk [vmem:[#allocation7] sm:$0xff] %vm389, %v387
    // Predicated region
    $region22: #{tpu_custom_call.1} parent=1 // pred_check
      _
    $region23: #{tpu_custom_call.1} parent=1 // pred_check_branch
      %392 = sbr.rel (0) target = $region25
    $region24: #{tpu_custom_call.1} parent=1 // pred_region
      %s394 = ssub.s32 128, 128
      %395 = vsyncadd [#allocation4], %s394
      %s397 = sshll.u32 [#allocation7], 4
      %s398 = int_to_ptr.vmem [resolvable:$true] %s397
      %400 = dma.vmem_to_hbm [thread:$0]  %s398, 128, %s3, [#allocation4]
    $region25: #{tpu_custom_call.1} parent=1 // pred_fallthru
      _
    // Predicated region
    $region26: #{tpu_custom_call.1} parent=1 // pred_check
      _
    $region27: #{tpu_custom_call.1} parent=1 // pred_check_branch
      %402 = sbr.rel (0) target = $region29
    $region28: #{tpu_custom_call.1} parent=1 // pred_region
      %403 = dma.done [#allocation4], 128
    $region29: #{tpu_custom_call.1} parent=1 // pred_fallthru
      _
    %404 = vsyncpa [#allocation3], 1
    %405 = vsyncpa [#allocation6], 1
    %406 = vsyncpa [#allocation4], 1

</llo_original>
